<compile_context>
chip_gen: v7x
topology: tpu7x:2x2x1
jax: 0.10.0
libtpu: 0.0.40
codegen_flags: <defaults>
</compile_context>

<pallas_src>
import jax
import jax.numpy as jnp
from jax.experimental import pallas as pl
from jax.experimental.pallas import tpu as pltpu


def ensemble_head_kernel(x_ref, w1_ref, b1_ref, w2_ref, b2_ref, w3_ref, b3_ref,
                         out_ref):
    # Biases read once per tile; kept in f32.
    b1 = b1_ref[...]
    b2 = b2_ref[...]
    b3 = b3_ref[...]

    # fc1: single (TB, 40) @ (40, 40) MXU dot, f32 accumulation.
    h = jnp.dot(x_ref[...], w1_ref[...], preferred_element_type=jnp.float32) + b1
    h = jnp.maximum(h, 0.0)                                   # relu1 (f32)

    # fc2: cast activations to the weight dtype (bf16 path) for the MXU,
    # accumulate in f32.
    h = jnp.dot(h.astype(w2_ref.dtype), w2_ref[...],
                preferred_element_type=jnp.float32) + b2
    h = jnp.maximum(h, 0.0)                                   # relu2 (f32)

    # fc3 + fold the bias add into the final store expression.
    out_ref[...] = (jnp.dot(h.astype(w3_ref.dtype), w3_ref[...],
                            preferred_element_type=jnp.float32)
                    + b3).astype(out_ref.dtype)


def _round_up(x, m):
    return ((x + m - 1) // m) * m


def ensemble_head(out1, out2, out3, out4, params, *,
                  compute_dtype=jnp.float32, tile_b=512):
    """params: w1 (40,40), b1 (1,40), w2 (40,20), b2 (1,20), w3 (20,10),
    b3 (1,10).  Weights stored as (in, out) so x @ W == PyTorch x @ W_pt.T."""
    B = out1.shape[0]

    # Lane-axis concat of the 4 sub-model logits: (B, 40).  Cheap in XLA and
    # lets the kernel issue one well-shaped matmul instead of 4 misaligned ones.
    x = jnp.concatenate([out1, out2, out3, out4], axis=1).astype(compute_dtype)

    w1 = params["w1"].astype(compute_dtype)
    w2 = params["w2"].astype(compute_dtype)
    w3 = params["w3"].astype(compute_dtype)
    b1 = params["b1"].astype(jnp.float32)
    b2 = params["b2"].astype(jnp.float32)
    b3 = params["b3"].astype(jnp.float32)

    # Batch tiling: tile rows are a multiple of 8 sublanes, capped at tile_b.
    tb = min(tile_b, _round_up(B, 8))
    padded_b = _round_up(B, tb)
    if padded_b != B:
        x = jnp.pad(x, ((0, padded_b - B), (0, 0)))
    grid = (pl.cdiv(padded_b, tb),)

    # Weights/biases stay resident in VMEM across grid iterations.
    resident = lambda arr: pl.BlockSpec(arr.shape, lambda i: (0, 0))

    out = pl.pallas_call(
        ensemble_head_kernel,
        out_shape=jax.ShapeDtypeStruct((padded_b, 10), jnp.float32),
        grid=grid,
        in_specs=[
            pl.BlockSpec((tb, 40), lambda i: (i, 0)),   # activations, tiled
            resident(w1), resident(b1),
            resident(w2), resident(b2),
            resident(w3), resident(b3),
        ],
        out_specs=pl.BlockSpec((tb, 10), lambda i: (i, 0)),
        compiler_params=pltpu.CompilerParams(
            dimension_semantics=("parallel",)),         # v7x: shard over 2 TCs
    )(x, w1, b1, w2, b2, w3, b3)
    return out[:B]


def init_linear(key, in_dim, out_dim):
    # PyTorch nn.Linear default init: U(-1/sqrt(in), 1/sqrt(in)) for W and b.
    kw, kb = jax.random.split(key)
    bound = 1.0 / jnp.sqrt(jnp.float32(in_dim))
    w_pt = jax.random.uniform(kw, (out_dim, in_dim), jnp.float32, -bound, bound)
    b = jax.random.uniform(kb, (out_dim,), jnp.float32, -bound, bound)
    return w_pt.T, b.reshape(1, out_dim)   # store (in, out); bias (1, out)


def reference_forward(out1, out2, out3, out4, params):
    x = jnp.concatenate([out1, out2, out3, out4], axis=1)
    h = jnp.maximum(x @ params["w1"] + params["b1"], 0.0)
    h = jnp.maximum(h @ params["w2"] + params["b2"], 0.0)
    return h @ params["w3"] + params["b3"]


if __name__ == "__main__":
    key = jax.random.PRNGKey(0)
    k1, k2, k3, k4, kf1, kf2, kf3, kbig = jax.random.split(key, 8)

    w1, b1 = init_linear(kf1, 40, 40)
    w2, b2 = init_linear(kf2, 40, 20)
    w3, b3 = init_linear(kf3, 20, 10)
    params = {"w1": w1, "b1": b1, "w2": w2, "b2": b2, "w3": w3, "b3": b3}

    # Small batch of graphs; each GAT sub-model emits (B, 10) logits.
    B = 8
    out1 = jax.random.normal(k1, (B, 10), jnp.float32)
    out2 = jax.random.normal(k2, (B, 10), jnp.float32)
    out3 = jax.random.normal(k3, (B, 10), jnp.float32)
    out4 = jax.random.normal(k4, (B, 10), jnp.float32)

    # f32 path: exact match to reference.
    y = ensemble_head(out1, out2, out3, out4, params)
    jax.block_until_ready(y)
    y_ref = reference_forward(out1, out2, out3, out4, params)
    assert y.shape == (B, 10)
    assert jnp.allclose(y, y_ref, atol=1e-5, rtol=1e-5)

    # bf16 operand path (v6e/v7x recommendation): f32 accumulation, looser tol.
    y_bf16 = ensemble_head(out1, out2, out3, out4, params,
                           compute_dtype=jnp.bfloat16)
    jax.block_until_ready(y_bf16)
    assert jnp.allclose(y_bf16, y_ref, atol=1e-1, rtol=1e-1)

    # Multi-tile / padded-batch path (exercises grid + row padding).
    Bb = 1037
    big = jax.random.normal(kbig, (Bb, 40), jnp.float32)
    o1b, o2b, o3b, o4b = big[:, :10], big[:, 10:20], big[:, 20:30], big[:, 30:40]
    yb = ensemble_head(o1b, o2b, o3b, o4b, params)
    jax.block_until_ready(yb)
    yb_ref = reference_forward(o1b, o2b, o3b, o4b, params)
    assert yb.shape == (Bb, 10)
    assert jnp.allclose(yb, yb_ref, atol=1e-5, rtol=1e-5)

    print("KERNEL_OK")
</pallas_src>

<mosaic_0001>
module attributes {stable_mosaic.version = 11 : i64} {
  func.func @ensemble_head_kernel(%arg0: i32, %arg1: memref<8x40xf32, #tpu.memory_space<vmem>>, %arg2: memref<40x40xf32, #tpu.memory_space<vmem>>, %arg3: memref<1x40xf32, #tpu.memory_space<vmem>>, %arg4: memref<40x20xf32, #tpu.memory_space<vmem>>, %arg5: memref<1x20xf32, #tpu.memory_space<vmem>>, %arg6: memref<20x10xf32, #tpu.memory_space<vmem>>, %arg7: memref<1x10xf32, #tpu.memory_space<vmem>>, %arg8: memref<8x10xf32, #tpu.memory_space<vmem>>) attributes {dimension_semantics = [#tpu.dimension_semantics<parallel>], iteration_bounds = array<i64: 1>, scalar_prefetch = 0 : i64, scratch_operands = 0 : i64, tpu.core_type = #tpu.core_type<tc>, window_params = [{transform_indices = @transform_0, window_bounds = array<i64: 8, 40>}, {pipeline_mode = #tpu.pipeline_mode<synchronous>, transform_indices = @transform_1, window_bounds = array<i64: 40, 40>}, {pipeline_mode = #tpu.pipeline_mode<synchronous>, transform_indices = @transform_2, window_bounds = array<i64: 1, 40>}, {pipeline_mode = #tpu.pipeline_mode<synchronous>, transform_indices = @transform_3, window_bounds = array<i64: 40, 20>}, {pipeline_mode = #tpu.pipeline_mode<synchronous>, transform_indices = @transform_4, window_bounds = array<i64: 1, 20>}, {pipeline_mode = #tpu.pipeline_mode<synchronous>, transform_indices = @transform_5, window_bounds = array<i64: 20, 10>}, {pipeline_mode = #tpu.pipeline_mode<synchronous>, transform_indices = @transform_6, window_bounds = array<i64: 1, 10>}, {transform_indices = @transform_7, window_bounds = array<i64: 8, 10>}]} {
    %c0 = arith.constant 0 : index
    %c0_0 = arith.constant 0 : index
    %0 = vector.load %arg3[%c0, %c0_0] : memref<1x40xf32, #tpu.memory_space<vmem>>, vector<1x40xf32>
    %c0_1 = arith.constant 0 : index
    %c0_2 = arith.constant 0 : index
    %1 = vector.load %arg5[%c0_1, %c0_2] : memref<1x20xf32, #tpu.memory_space<vmem>>, vector<1x20xf32>
    %c0_3 = arith.constant 0 : index
    %c0_4 = arith.constant 0 : index
    %2 = vector.load %arg7[%c0_3, %c0_4] : memref<1x10xf32, #tpu.memory_space<vmem>>, vector<1x10xf32>
    %c0_5 = arith.constant 0 : index
    %c0_6 = arith.constant 0 : index
    %3 = vector.load %arg1[%c0_5, %c0_6] : memref<8x40xf32, #tpu.memory_space<vmem>>, vector<8x40xf32>
    %c0_7 = arith.constant 0 : index
    %c0_8 = arith.constant 0 : index
    %4 = vector.load %arg2[%c0_7, %c0_8] : memref<40x40xf32, #tpu.memory_space<vmem>>, vector<40x40xf32>
    %cst = arith.constant dense<0.000000e+00> : vector<8x40xf32>
    %5 = tpu.matmul %3, %4, %cst {dimension_numbers = #tpu.dot_dimension_numbers<[1], [0], [0], [1], [0, 0, 1, 1], [], []>} : vector<8x40xf32>, vector<40x40xf32>, vector<8x40xf32> -> vector<8x40xf32>
    %6 = vector.broadcast %0 : vector<1x40xf32> to vector<8x40xf32>
    %7 = arith.addf %5, %6 : vector<8x40xf32>
    %cst_9 = arith.constant 0.000000e+00 : f32
    %8 = vector.broadcast %cst_9 : f32 to vector<8x40xf32>
    %9 = arith.maximumf %7, %8 : vector<8x40xf32>
    %c0_10 = arith.constant 0 : index
    %c0_11 = arith.constant 0 : index
    %10 = vector.load %arg4[%c0_10, %c0_11] : memref<40x20xf32, #tpu.memory_space<vmem>>, vector<40x20xf32>
    %cst_12 = arith.constant dense<0.000000e+00> : vector<8x20xf32>
    %11 = tpu.matmul %9, %10, %cst_12 {dimension_numbers = #tpu.dot_dimension_numbers<[1], [0], [0], [1], [0, 0, 1, 1], [], []>} : vector<8x40xf32>, vector<40x20xf32>, vector<8x20xf32> -> vector<8x20xf32>
    %12 = vector.broadcast %1 : vector<1x20xf32> to vector<8x20xf32>
    %13 = arith.addf %11, %12 : vector<8x20xf32>
    %cst_13 = arith.constant 0.000000e+00 : f32
    %14 = vector.broadcast %cst_13 : f32 to vector<8x20xf32>
    %15 = arith.maximumf %13, %14 : vector<8x20xf32>
    %c0_14 = arith.constant 0 : index
    %c0_15 = arith.constant 0 : index
    %16 = vector.load %arg6[%c0_14, %c0_15] : memref<20x10xf32, #tpu.memory_space<vmem>>, vector<20x10xf32>
    %cst_16 = arith.constant dense<0.000000e+00> : vector<8x10xf32>
    %17 = tpu.matmul %15, %16, %cst_16 {dimension_numbers = #tpu.dot_dimension_numbers<[1], [0], [0], [1], [0, 0, 1, 1], [], []>} : vector<8x20xf32>, vector<20x10xf32>, vector<8x10xf32> -> vector<8x10xf32>
    %18 = vector.broadcast %2 : vector<1x10xf32> to vector<8x10xf32>
    %19 = arith.addf %17, %18 : vector<8x10xf32>
    %c0_17 = arith.constant 0 : index
    %c0_18 = arith.constant 0 : index
    %20 = vector.load %arg8[%c0_17, %c0_18] : memref<8x10xf32, #tpu.memory_space<vmem>>, vector<8x10xf32>
    tpu.vector_store %arg8[%c0_17, %c0_18], %19 {strides = array<i32>} : memref<8x10xf32, #tpu.memory_space<vmem>>, vector<8x10xf32>,
    return
  }
  func.func @transform_0(%arg0: i32) -> (i32, i32) {
    %c0_i32 = arith.constant 0 : i32
    %c0_i32_0 = arith.constant 0 : i32
    return %arg0, %c0_i32 : i32, i32
  }
  func.func @transform_1(%arg0: i32) -> (i32, i32) {
    %c0_i32 = arith.constant 0 : i32
    %c0_i32_0 = arith.constant 0 : i32
    %c0_i32_1 = arith.constant 0 : i32
    return %c0_i32, %c0_i32_0 : i32, i32
  }
  func.func @transform_2(%arg0: i32) -> (i32, i32) {
    %c0_i32 = arith.constant 0 : i32
    %c0_i32_0 = arith.constant 0 : i32
    %c0_i32_1 = arith.constant 0 : i32
    return %c0_i32, %c0_i32_0 : i32, i32
  }
  func.func @transform_3(%arg0: i32) -> (i32, i32) {
    %c0_i32 = arith.constant 0 : i32
    %c0_i32_0 = arith.constant 0 : i32
    %c0_i32_1 = arith.constant 0 : i32
    return %c0_i32, %c0_i32_0 : i32, i32
  }
  func.func @transform_4(%arg0: i32) -> (i32, i32) {
    %c0_i32 = arith.constant 0 : i32
    %c0_i32_0 = arith.constant 0 : i32
    %c0_i32_1 = arith.constant 0 : i32
    return %c0_i32, %c0_i32_0 : i32, i32
  }
  func.func @transform_5(%arg0: i32) -> (i32, i32) {
    %c0_i32 = arith.constant 0 : i32
    %c0_i32_0 = arith.constant 0 : i32
    %c0_i32_1 = arith.constant 0 : i32
    return %c0_i32, %c0_i32_0 : i32, i32
  }
  func.func @transform_6(%arg0: i32) -> (i32, i32) {
    %c0_i32 = arith.constant 0 : i32
    %c0_i32_0 = arith.constant 0 : i32
    %c0_i32_1 = arith.constant 0 : i32
    return %c0_i32, %c0_i32_0 : i32, i32
  }
  func.func @transform_7(%arg0: i32) -> (i32, i32) {
    %c0_i32 = arith.constant 0 : i32
    %c0_i32_0 = arith.constant 0 : i32
    return %arg0, %c0_i32 : i32, i32
  }
}

</mosaic_0001>

<llo_original>
// kernel: tpu_custom_call.1
$region0: #{tpu_custom_call.1}
  #allocation0 [shape = 'u32[]', space=smem, size = 0x4, offset = 0x4, fixed_abs, tag = 'smem constant byte address 0x4 - core index']
  #allocation1 [shape = 'u32[144,128]{1,0:T(1,128)}', space=vmem, size = 0x12000, scoped, tag = 'internal scratch']
  %s0 = inlined_call_operand.vmem [shape: f32[8,40], index: 0, kind: input, shape index: {}]
  %s1 = inlined_call_operand.vmem [shape: f32[40,40], index: 1, kind: input, shape index: {}]
  %s2 = inlined_call_operand.vmem [shape: f32[1,40], index: 2, kind: input, shape index: {}]
  %s3 = inlined_call_operand.vmem [shape: f32[40,20], index: 3, kind: input, shape index: {}]
  %s4 = inlined_call_operand.vmem [shape: f32[1,20], index: 4, kind: input, shape index: {}]
  %s5 = inlined_call_operand.vmem [shape: f32[20,10], index: 5, kind: input, shape index: {}]
  %s6 = inlined_call_operand.vmem [shape: f32[1,10], index: 6, kind: input, shape index: {}]
  %s7 = inlined_call_operand.hbm [shape: f32[8,10], index: 7, kind: output, shape index: {}]
  %s8 = sld [smem:[#allocation0]]
  $region38: #{tpu_custom_call.1} parent=0
    _
  %s10 = ssub.s32 1, %s8
  %s11 = scalar_select 0, %s10, %s8
  $region1: #{tpu_custom_call.1} parent=0
    #allocation2 [shape = 'u8[4096]{0}', space=vmem, size = 0x1000, scoped, tag = 'output window, operand 0, single buffered']
    #allocation3 [shape = 's32[1]{0}', space=sflag, size = 0x4, scoped, tag = 'scoped memory for tpu_custom_call.1']
    %12 = vsyncpa [#allocation3], 0
    // Predicated region
    $region2: #{tpu_custom_call.1} parent=1 // pred_check
      _
    $region3: #{tpu_custom_call.1} parent=1 // pred_check_branch
      %14 = sbr.rel (0) target = $region5
    $region4: #{tpu_custom_call.1} parent=1 // pred_region
      _
    $region5: #{tpu_custom_call.1} parent=1 // pred_fallthru
      _
    // Predicated region
    $region6: #{tpu_custom_call.1} parent=1 // pred_check
      _
    $region7: #{tpu_custom_call.1} parent=1 // pred_check_branch
      %16 = sbr.rel (0) target = $region9
    $region8: #{tpu_custom_call.1} parent=1 // pred_region
      _
    $region9: #{tpu_custom_call.1} parent=1 // pred_fallthru
      _
    // Predicated region
    $region10: #{tpu_custom_call.1} parent=1 // pred_check
      _
    $region11: #{tpu_custom_call.1} parent=1 // pred_check_branch
      %18 = sbr.rel (0) target = $region13
    $region12: #{tpu_custom_call.1} parent=1 // pred_region
      _
    $region13: #{tpu_custom_call.1} parent=1 // pred_fallthru
      _
    // Predicated region
    $region14: #{tpu_custom_call.1} parent=1 // pred_check
      _
    $region15: #{tpu_custom_call.1} parent=1 // pred_check_branch
      %20 = sbr.rel (0) target = $region17
    $region16: #{tpu_custom_call.1} parent=1 // pred_region
      _
    $region17: #{tpu_custom_call.1} parent=1 // pred_fallthru
      _
    // Predicated region
    $region18: #{tpu_custom_call.1} parent=1 // pred_check
      _
    $region19: #{tpu_custom_call.1} parent=1 // pred_check_branch
      %22 = sbr.rel (0) target = $region21
    $region20: #{tpu_custom_call.1} parent=1 // pred_region
      _
    $region21: #{tpu_custom_call.1} parent=1 // pred_fallthru
      _
    // Predicated region
    $region22: #{tpu_custom_call.1} parent=1 // pred_check
      _
    $region23: #{tpu_custom_call.1} parent=1 // pred_check_branch
      %24 = sbr.rel (0) target = $region25
    $region24: #{tpu_custom_call.1} parent=1 // pred_region
      _
    $region25: #{tpu_custom_call.1} parent=1 // pred_fallthru
      _
    // Predicated region
    $region26: #{tpu_custom_call.1} parent=1 // pred_check
      _
    $region27: #{tpu_custom_call.1} parent=1 // pred_check_branch
      %26 = sbr.rel (0) target = $region29
    $region28: #{tpu_custom_call.1} parent=1 // pred_region
      _
    $region29: #{tpu_custom_call.1} parent=1 // pred_fallthru
      _
    %v27 = vld [vmem:[%s2] sm:$0x1]
    %v28 = vld [vmem:[%s4] sm:$0x1]
    %v29 = vld [vmem:[%s6] sm:$0x1]
    %v30 = vld [vmem:[%s0] sm:$0xff]
    %v31 = vld [vmem:[%s1] sm:$0xff]
    %v32 = vld [vmem:[%s1 + $0x8] sm:$0xff]
    %v33 = vld [vmem:[%s1 + $0x10] sm:$0xff]
    %v34 = vld [vmem:[%s1 + $0x18] sm:$0xff]
    %v35 = vld [vmem:[%s1 + $0x20] sm:$0xff]
    %v37 = vlaneseq
    %v38 = vshrl.u32 %v37, 7
    %v39 = vsub.s32 0, %v38
    %v40 = vrot.slane %v27, %v39
    %vm42 = vcmask 326656
    %v44 = vsel %vm42, %v30, 0
    %46 = vmatprep.subr.mxu0 0.0
    %47 = vmatpush1.msra.mxu0 %v31
    %48 = vmatprep.subr.mxu0 0.0
    %49 = vmatpush1.msra.mxu0 %v32
    %50 = vmatprep.subr.mxu0 0.0
    %51 = vmatpush1.msra.mxu0 %v33
    %52 = vmatprep.subr.mxu0 0.0
    %53 = vmatpush1.msra.mxu0 %v34
    %54 = vmatprep.subr.mxu0 0.0
    %55 = vmatpush1.msra.mxu0 %v35
    %56 = vmatprep.subr.mxu0 0.0
    %57 = vmatpush1.msra.mxu0 0.0
    %58 = vmatprep.subr.mxu0 0.0
    %59 = vmatpush1.msra.mxu0 0.0
    %60 = vmatprep.subr.mxu0 0.0
    %61 = vmatpush1.msra.mxu0 0.0
    %62 = vmatprep.subr.mxu0 0.0
    %63 = vmatpush1.msra.mxu0 0.0
    %64 = vmatprep.subr.mxu0 0.0
    %65 = vmatpush1.msra.mxu0 0.0
    %66 = vmatprep.subr.mxu0 0.0
    %67 = vmatpush1.msra.mxu0 0.0
    %68 = vmatprep.subr.mxu0 0.0
    %69 = vmatpush1.msra.mxu0 0.0
    %70 = vmatprep.subr.mxu0 0.0
    %71 = vmatpush1.msra.mxu0 0.0
    %72 = vmatprep.subr.mxu0 0.0
    %73 = vmatpush1.msra.mxu0 0.0
    %74 = vmatprep.subr.mxu0 0.0
    %75 = vmatpush1.msra.mxu0 0.0
    %76 = vmatprep.subr.mxu0 0.0
    %77 = vmatpush1.msra.mxu0 0.0
    %78 = vmatprep.subr.mxu0 0.0
    %79 = vmatpush1.msra.mxu0 0.0
    %80 = vmatprep.subr.mxu0 0.0
    %81 = vmatpush1.msra.mxu0 0.0
    %82 = vmatprep.subr.mxu0 0.0
    %83 = vmatpush1.msra.mxu0 0.0
    %84 = vmatprep.subr.mxu0 0.0
    %85 = vmatpush1.msra.mxu0 0.0
    %86 = vmatprep.subr.mxu0 0.0
    %87 = vmatpush1.msra.mxu0 0.0
    %88 = vmatprep.subr.mxu0 0.0
    %89 = vmatpush1.msra.mxu0 0.0
    %90 = vmatprep.subr.mxu0 0.0
    %91 = vmatpush1.msra.mxu0 0.0
    %92 = vmatprep.subr.mxu0 0.0
    %93 = vmatpush1.msra.mxu0 0.0
    %94 = vmatprep.subr.mxu0 0.0
    %95 = vmatpush1.msra.mxu0 0.0
    %96 = vmatprep.subr.mxu0 0.0
    %97 = vmatpush1.msra.mxu0 0.0
    %98 = vmatprep.subr.mxu0 0.0
    %99 = vmatpush1.msra.mxu0 0.0
    %100 = vmatprep.subr.mxu0 0.0
    %101 = vmatpush1.msra.mxu0 0.0
    %102 = vmatprep.subr.mxu0 0.0
    %103 = vmatpush1.msra.mxu0 0.0
    %104 = vmatprep.subr.mxu0 0.0
    %105 = vmatpush1.msra.mxu0 0.0
    %106 = vmatprep.subr.mxu0 0.0
    %107 = vmatpush1.msra.mxu0 0.0
    %108 = vmatprep.subr.mxu0 0.0
    %109 = vmatpush1.msra.mxu0 0.0
    %110 = vmatprep.mubr.f32.mxu0 0.0
    %111 = vmatmul.mubr.f32.gmra.mrb[0].mxu0 %v44
    %v112 = vpop.f32.mrb[0].mxu0
    %v113 = vadd.f32 %v40, %v112
    %v114 = vpop.f32.mrb[0].mxu0
    %115 = vdwg.mxu0
    %v116 = vmax.f32 %v113, 0.0
    %v117 = vld [vmem:[%s3] sm:$0xff]
    %v118 = vld [vmem:[%s3 + $0x8] sm:$0xff]
    %v119 = vld [vmem:[%s3 + $0x10] sm:$0xff]
    %v120 = vld [vmem:[%s3 + $0x18] sm:$0xff]
    %v121 = vld [vmem:[%s3 + $0x20] sm:$0xff]
    %v123 = vlaneseq
    %v124 = vshrl.u32 %v123, 7
    %v125 = vsub.s32 0, %v124
    %v126 = vrot.slane %v28, %v125
    %v129 = vsel %vm42, %v116, 0
    %131 = vmatprep.subr.mxu0 0.0
    %132 = vmatpush1.msra.mxu0 %v117
    %133 = vmatprep.subr.mxu0 0.0
    %134 = vmatpush1.msra.mxu0 %v118
    %135 = vmatprep.subr.mxu0 0.0
    %136 = vmatpush1.msra.mxu0 %v119
    %137 = vmatprep.subr.mxu0 0.0
    %138 = vmatpush1.msra.mxu0 %v120
    %139 = vmatprep.subr.mxu0 0.0
    %140 = vmatpush1.msra.mxu0 %v121
    %141 = vmatprep.subr.mxu0 0.0
    %142 = vmatpush1.msra.mxu0 0.0
    %143 = vmatprep.subr.mxu0 0.0
    %144 = vmatpush1.msra.mxu0 0.0
    %145 = vmatprep.subr.mxu0 0.0
    %146 = vmatpush1.msra.mxu0 0.0
    %147 = vmatprep.subr.mxu0 0.0
    %148 = vmatpush1.msra.mxu0 0.0
    %149 = vmatprep.subr.mxu0 0.0
    %150 = vmatpush1.msra.mxu0 0.0
    %151 = vmatprep.subr.mxu0 0.0
    %152 = vmatpush1.msra.mxu0 0.0
    %153 = vmatprep.subr.mxu0 0.0
    %154 = vmatpush1.msra.mxu0 0.0
    %155 = vmatprep.subr.mxu0 0.0
    %156 = vmatpush1.msra.mxu0 0.0
    %157 = vmatprep.subr.mxu0 0.0
    %158 = vmatpush1.msra.mxu0 0.0
    %159 = vmatprep.subr.mxu0 0.0
    %160 = vmatpush1.msra.mxu0 0.0
    %161 = vmatprep.subr.mxu0 0.0
    %162 = vmatpush1.msra.mxu0 0.0
    %163 = vmatprep.subr.mxu0 0.0
    %164 = vmatpush1.msra.mxu0 0.0
    %165 = vmatprep.subr.mxu0 0.0
    %166 = vmatpush1.msra.mxu0 0.0
    %167 = vmatprep.subr.mxu0 0.0
    %168 = vmatpush1.msra.mxu0 0.0
    %169 = vmatprep.subr.mxu0 0.0
    %170 = vmatpush1.msra.mxu0 0.0
    %171 = vmatprep.subr.mxu0 0.0
    %172 = vmatpush1.msra.mxu0 0.0
    %173 = vmatprep.subr.mxu0 0.0
    %174 = vmatpush1.msra.mxu0 0.0
    %175 = vmatprep.subr.mxu0 0.0
    %176 = vmatpush1.msra.mxu0 0.0
    %177 = vmatprep.subr.mxu0 0.0
    %178 = vmatpush1.msra.mxu0 0.0
    %179 = vmatprep.subr.mxu0 0.0
    %180 = vmatpush1.msra.mxu0 0.0
    %181 = vmatprep.subr.mxu0 0.0
    %182 = vmatpush1.msra.mxu0 0.0
    %183 = vmatprep.subr.mxu0 0.0
    %184 = vmatpush1.msra.mxu0 0.0
    %185 = vmatprep.subr.mxu0 0.0
    %186 = vmatpush1.msra.mxu0 0.0
    %187 = vmatprep.subr.mxu0 0.0
    %188 = vmatpush1.msra.mxu0 0.0
    %189 = vmatprep.subr.mxu0 0.0
    %190 = vmatpush1.msra.mxu0 0.0
    %191 = vmatprep.subr.mxu0 0.0
    %192 = vmatpush1.msra.mxu0 0.0
    %193 = vmatprep.subr.mxu0 0.0
    %194 = vmatpush1.msra.mxu0 0.0
    %195 = vmatprep.mubr.f32.mxu0 0.0
    %196 = vmatmul.mubr.f32.gmra.mrb[0].mxu0 %v129
    %v197 = vpop.f32.mrb[0].mxu0
    %v198 = vadd.f32 %v126, %v197
    %v199 = vpop.f32.mrb[0].mxu0
    %200 = vdwg.mxu0
    %v201 = vmax.f32 %v198, 0.0
    %v202 = vld [vmem:[%s5] sm:$0xff]
    %v203 = vld [vmem:[%s5 + $0x8] sm:$0xff]
    %v204 = vld [vmem:[%s5 + $0x10] sm:$0xf]
    %v206 = vlaneseq
    %v207 = vshrl.u32 %v206, 7
    %v208 = vsub.s32 0, %v207
    %v209 = vrot.slane %v29, %v208
    %vm211 = vcmask 162816
    %v213 = vsel %vm211, %v201, 0
    %vm215 = vcmask 1043456
    %v217 = vsel %vm215, %v204, 0
    %219 = vmatprep.subr.mxu0 0.0
    %220 = vmatpush1.msra.mxu0 %v202
    %221 = vmatprep.subr.mxu0 0.0
    %222 = vmatpush1.msra.mxu0 %v203
    %223 = vmatprep.subr.mxu0 0.0
    %224 = vmatpush1.msra.mxu0 %v217
    %225 = vmatprep.subr.mxu0 0.0
    %226 = vmatpush1.msra.mxu0 0.0
    %227 = vmatprep.subr.mxu0 0.0
    %228 = vmatpush1.msra.mxu0 0.0
    %229 = vmatprep.subr.mxu0 0.0
    %230 = vmatpush1.msra.mxu0 0.0
    %231 = vmatprep.subr.mxu0 0.0
    %232 = vmatpush1.msra.mxu0 0.0
    %233 = vmatprep.subr.mxu0 0.0
    %234 = vmatpush1.msra.mxu0 0.0
    %235 = vmatprep.subr.mxu0 0.0
    %236 = vmatpush1.msra.mxu0 0.0
    %237 = vmatprep.subr.mxu0 0.0
    %238 = vmatpush1.msra.mxu0 0.0
    %239 = vmatprep.subr.mxu0 0.0
    %240 = vmatpush1.msra.mxu0 0.0
    %241 = vmatprep.subr.mxu0 0.0
    %242 = vmatpush1.msra.mxu0 0.0
    %243 = vmatprep.subr.mxu0 0.0
    %244 = vmatpush1.msra.mxu0 0.0
    %245 = vmatprep.subr.mxu0 0.0
    %246 = vmatpush1.msra.mxu0 0.0
    %247 = vmatprep.subr.mxu0 0.0
    %248 = vmatpush1.msra.mxu0 0.0
    %249 = vmatprep.subr.mxu0 0.0
    %250 = vmatpush1.msra.mxu0 0.0
    %251 = vmatprep.subr.mxu0 0.0
    %252 = vmatpush1.msra.mxu0 0.0
    %253 = vmatprep.subr.mxu0 0.0
    %254 = vmatpush1.msra.mxu0 0.0
    %255 = vmatprep.subr.mxu0 0.0
    %256 = vmatpush1.msra.mxu0 0.0
    %257 = vmatprep.subr.mxu0 0.0
    %258 = vmatpush1.msra.mxu0 0.0
    %259 = vmatprep.subr.mxu0 0.0
    %260 = vmatpush1.msra.mxu0 0.0
    %261 = vmatprep.subr.mxu0 0.0
    %262 = vmatpush1.msra.mxu0 0.0
    %263 = vmatprep.subr.mxu0 0.0
    %264 = vmatpush1.msra.mxu0 0.0
    %265 = vmatprep.subr.mxu0 0.0
    %266 = vmatpush1.msra.mxu0 0.0
    %267 = vmatprep.subr.mxu0 0.0
    %268 = vmatpush1.msra.mxu0 0.0
    %269 = vmatprep.subr.mxu0 0.0
    %270 = vmatpush1.msra.mxu0 0.0
    %271 = vmatprep.subr.mxu0 0.0
    %272 = vmatpush1.msra.mxu0 0.0
    %273 = vmatprep.subr.mxu0 0.0
    %274 = vmatpush1.msra.mxu0 0.0
    %275 = vmatprep.subr.mxu0 0.0
    %276 = vmatpush1.msra.mxu0 0.0
    %277 = vmatprep.subr.mxu0 0.0
    %278 = vmatpush1.msra.mxu0 0.0
    %279 = vmatprep.subr.mxu0 0.0
    %280 = vmatpush1.msra.mxu0 0.0
    %281 = vmatprep.subr.mxu0 0.0
    %282 = vmatpush1.msra.mxu0 0.0
    %283 = vmatprep.mubr.f32.mxu0 0.0
    %284 = vmatmul.mubr.f32.gmra.mrb[0].mxu0 %v213
    %v285 = vpop.f32.mrb[0].mxu0
    %v286 = vadd.f32 %v209, %v285
    %v287 = vpop.f32.mrb[0].mxu0
    %288 = vdwg.mxu0
    %vm289 = vcmask 80896
    %290 = vst.msk [vmem:[#allocation2] sm:$0xff] %vm289, %v286
    // Predicated region
    $region30: #{tpu_custom_call.1} parent=1 // pred_check
      _
    $region31: #{tpu_custom_call.1} parent=1 // pred_check_branch
      %292 = sbr.rel (0) target = $region33
    $region32: #{tpu_custom_call.1} parent=1 // pred_region
      %s294 = ssub.s32 128, 128
      %295 = vsyncadd [#allocation3], %s294
      %s297 = sshll.u32 [#allocation2], 4
      %s298 = int_to_ptr.vmem [resolvable:$true] %s297
      %300 = dma.vmem_to_hbm [thread:$0]  %s298, 128, %s7, [#allocation3]
    $region33: #{tpu_custom_call.1} parent=1 // pred_fallthru
      _
    // Predicated region
    $region34: #{tpu_custom_call.1} parent=1 // pred_check
      _
    $region35: #{tpu_custom_call.1} parent=1 // pred_check_branch
      %302 = sbr.rel (0) target = $region37
    $region36: #{tpu_custom_call.1} parent=1 // pred_region
      %303 = dma.done [#allocation3], 128
    $region37: #{tpu_custom_call.1} parent=1 // pred_fallthru
      _
    %304 = vsyncpa [#allocation3], 1

</llo_original>
